<compile_context>
chip_gen: v5e
topology: v5e:2x2
jax: 0.10.0
libtpu: 0.0.40
codegen_flags: <defaults>
</compile_context>

<pallas_src>
import functools

import jax
import jax.numpy as jnp
from jax.experimental import pallas as pl
from jax.experimental.pallas import tpu as pltpu


def transformer_kernel(x_ref, wqkv_ref, wff_ref, bff_ref,
                       rt_ref, bt_ref, rv_ref, bv_ref, o_ref):
    """Single grid step over the whole (lane-flattened, lane-padded) problem.

    x_ref    : (in_c+1, NVT_pad)   input with trailing ones-row (bias lane); padded lanes zero
    wqkv_ref : (3*mid_c, in_c+1)   [Wq|bq ; (Wk|bk)/mid_c ; Wv|bv]
    wff_ref  : (out_c, mid_c)      output 1x1-conv weight
    bff_ref  : (out_c, 1)          output 1x1-conv bias
    rt_ref   : (NVT_pad, N*V)      bf16 0/1: sum over t within (n,v)
    bt_ref   : (N*V, NVT_pad)      bf16 0/1: broadcast (n,v) value back over t
    rv_ref   : (NVT_pad, N*T)      bf16 0/1: sum over v within (n,t)
    bv_ref   : (N*T, NVT_pad)      bf16 0/1: broadcast (n,t) value back over v
    o_ref    : (out_c, NVT_pad)
    """
    mid_c = wqkv_ref.shape[0] // 3

    x = x_ref[...]                                                        # (in_c+1, NVT_pad)

    # Fused Q/K/V projection (biases via the ones-row of x; 1/mid_c already in K rows).
    qkv = jnp.dot(wqkv_ref[...], x, preferred_element_type=jnp.float32)  # (3*mid_c, NVT_pad)
    q = qkv[0:mid_c, :]
    k = qkv[mid_c:2 * mid_c, :]
    v = qkv[2 * mid_c:3 * mid_c, :]

    # Segment factors: bf16 0/1 constants (exact); cast to f32 for the MXU path.
    r_t = rt_ref[...].astype(jnp.float32)
    b_t = bt_ref[...].astype(jnp.float32)
    r_v = rv_ref[...].astype(jnp.float32)
    b_v = bv_ref[...].astype(jnp.float32)

    # ksum[c, (n,v)] = sum_t k_scaled[c,(n,v,t)]; expand back over t.
    ksum = jnp.dot(k, r_t, preferred_element_type=jnp.float32)           # (mid_c, N*V)
    ksum_exp = jnp.dot(ksum, b_t, preferred_element_type=jnp.float32)    # (mid_c, NVT_pad)

    # u[(n,v,t)] = sum_c q[c,(n,v,t)] * ksum_exp[c,(n,v,t)]   (sublane reduce)
    u = jnp.sum(q * ksum_exp, axis=0, keepdims=True)                     # (1, NVT_pad)

    # s[(n,v,t)] = s[n,t] = sum_{v'} u[(n,v',t)]  (segmented sum over v + broadcast back)
    s_nt = jnp.dot(u, r_v, preferred_element_type=jnp.float32)           # (1, N*T)
    s = jnp.dot(s_nt, b_v, preferred_element_type=jnp.float32)           # (1, NVT_pad)

    # y = v * s (broadcast over channels), then output 1x1 conv — one wide store.
    y = v * s                                                            # (mid_c, NVT_pad)
    out = jnp.dot(wff_ref[...], y, preferred_element_type=jnp.float32) + bff_ref[...]
    o_ref[...] = out.astype(o_ref.dtype)


@functools.partial(jax.jit, static_argnames=())
def transformer_forward(x, params):
    wq, bq, wk, bk, wv, bv, wff, bff = params
    N, in_c, V, T = x.shape
    mid_c = wq.shape[0]
    out_c = wff.shape[0]
    NVT = N * V * T
    LANE = 128
    NVT_pad = ((NVT + LANE - 1) // LANE) * LANE                          # 160 -> 256

    # Lane-dense input: (in_c, N*V*T) plus a trailing ones-row for the fused QKV bias,
    # then zero-pad the lane axis to a multiple of 128 (padded lanes fully zero,
    # including the ones-row, so q/k/v vanish there).
    x2d = jnp.transpose(x, (1, 0, 2, 3)).reshape(in_c, NVT)
    x_aug = jnp.concatenate([x2d, jnp.ones((1, NVT), x2d.dtype)], axis=0)  # (in_c+1, NVT)
    x_aug = jnp.pad(x_aug, ((0, 0), (0, NVT_pad - NVT)))                   # (in_c+1, NVT_pad)

    # Fused QKV weight with bias column appended; fold 1/mid_c into the K rows so the
    # segment factors stay pure 0/1.
    inv_mid = jnp.float32(1.0 / mid_c)
    w_qkv = jnp.concatenate(
        [jnp.concatenate([wq, bq], axis=1),
         jnp.concatenate([wk, bk], axis=1) * inv_mid,
         jnp.concatenate([wv, bv], axis=1)], axis=0)                     # (3*mid_c, in_c+1)

    # Factored segment operators (0/1, exactly representable in bf16).
    # Lane flatten order is (n, v, t) fastest-last (matches transpose(1,0,2,3).reshape).
    b_t = jnp.kron(jnp.eye(N * V, dtype=jnp.float32),
                   jnp.ones((1, T), jnp.float32))                        # (N*V, NVT)
    b_v = jnp.kron(jnp.eye(N, dtype=jnp.float32),
                   jnp.kron(jnp.ones((1, V), jnp.float32),
                            jnp.eye(T, dtype=jnp.float32)))              # (N*T, NVT)
    pad_cols = ((0, 0), (0, NVT_pad - NVT))
    b_t_p = jnp.pad(b_t, pad_cols).astype(jnp.bfloat16)                  # (N*V, NVT_pad)
    b_v_p = jnp.pad(b_v, pad_cols).astype(jnp.bfloat16)                  # (N*T, NVT_pad)
    r_t_p = b_t_p.T                                                      # (NVT_pad, N*V)
    r_v_p = b_v_p.T                                                      # (NVT_pad, N*T)

    zmap = lambda i: (0, 0)
    out2d = pl.pallas_call(
        transformer_kernel,
        out_shape=jax.ShapeDtypeStruct((out_c, NVT_pad), jnp.float32),
        grid_spec=pltpu.PrefetchScalarGridSpec(
            num_scalar_prefetch=0,
            grid=(1,),
            in_specs=[
                pl.BlockSpec((in_c + 1, NVT_pad), zmap),
                pl.BlockSpec((3 * mid_c, in_c + 1), zmap),
                pl.BlockSpec((out_c, mid_c), zmap),
                pl.BlockSpec((out_c, 1), zmap),
                pl.BlockSpec((NVT_pad, N * V), zmap),
                pl.BlockSpec((N * V, NVT_pad), zmap),
                pl.BlockSpec((NVT_pad, N * T), zmap),
                pl.BlockSpec((N * T, NVT_pad), zmap),
            ],
            out_specs=pl.BlockSpec((out_c, NVT_pad), zmap),
        ),
        compiler_params=pltpu.CompilerParams(
            dimension_semantics=("arbitrary",)),
    )(x_aug, w_qkv, wff, bff, r_t_p, b_t_p, r_v_p, b_v_p)

    # Drop the lane padding and go back to the PyTorch NCHW-style layout (N, out_c, V, T).
    out2d = out2d[:, :NVT]
    return jnp.transpose(out2d.reshape(out_c, N, V, T), (1, 0, 2, 3))


def reference_forward(x, params):
    """Pure-JAX reference replicating the PyTorch module exactly."""
    wq, bq, wk, bk, wv, bv, wff, bff = params
    mid_c = wq.shape[0]

    def conv1x1(t, w, b):
        return jnp.einsum('ncvt,dc->ndvt', t, w) + b.reshape(1, -1, 1, 1)

    q = conv1x1(x, wq, bq)
    k = conv1x1(x, wk, bk)
    v = conv1x1(x, wv, bv)
    a = jnp.einsum('ncvt,ncvq->ntq', q, k) / mid_c
    y = jnp.einsum('ntq,ncvt->ncvt', a, v)
    return conv1x1(y, wff, bff)


def init_params(key, in_c, mid_c, out_c):
    """Deterministic parameter init (Conv2d-1x1 weights squeezed to 2-D)."""
    ks = jax.random.split(key, 8)

    def lin(kw, kb, fan_out, fan_in):
        scale = 1.0 / jnp.sqrt(jnp.float32(fan_in))
        w = jax.random.uniform(kw, (fan_out, fan_in), jnp.float32, -scale, scale)
        b = jax.random.uniform(kb, (fan_out, 1), jnp.float32, -scale, scale)
        return w, b

    wq, bq = lin(ks[0], ks[1], mid_c, in_c)
    wk, bk = lin(ks[2], ks[3], mid_c, in_c)
    wv, bv = lin(ks[4], ks[5], mid_c, in_c)
    wff, bff = lin(ks[6], ks[7], out_c, mid_c)
    return wq, bq, wk, bk, wv, bv, wff, bff


if __name__ == "__main__":
    # Small shapes: batch=2, in_c=4, mid_c=8, out_c=6, V(=H)=5 joints, T(=W)=16 frames.
    N, in_c, mid_c, out_c, V, T = 2, 4, 8, 6, 5, 16

    key = jax.random.PRNGKey(0)
    kx, kp = jax.random.split(key)
    x = jax.random.normal(kx, (N, in_c, V, T), dtype=jnp.float32)
    params = init_params(kp, in_c, mid_c, out_c)

    out = transformer_forward(x, params)
    out = jax.block_until_ready(out)

    ref = jax.block_until_ready(reference_forward(x, params))
    assert out.shape == (N, out_c, V, T)
    assert jnp.allclose(out, ref, atol=1e-4, rtol=1e-4), (
        f"max abs err {jnp.max(jnp.abs(out - ref))}")

    print("KERNEL_OK")
</pallas_src>

<mosaic_0001>
module attributes {stable_mosaic.version = 11 : i64} {
  func.func @transformer_kernel(%arg0: i32, %arg1: memref<5x256xf32, #tpu.memory_space<vmem>>, %arg2: memref<24x5xf32, #tpu.memory_space<vmem>>, %arg3: memref<6x8xf32, #tpu.memory_space<vmem>>, %arg4: memref<6x1xf32, #tpu.memory_space<vmem>>, %arg5: memref<256x10xbf16, #tpu.memory_space<vmem>>, %arg6: memref<10x256xbf16, #tpu.memory_space<vmem>>, %arg7: memref<256x32xbf16, #tpu.memory_space<vmem>>, %arg8: memref<32x256xbf16, #tpu.memory_space<vmem>>, %arg9: memref<6x256xf32, #tpu.memory_space<vmem>>) attributes {dimension_semantics = [#tpu.dimension_semantics<arbitrary>], iteration_bounds = array<i64: 1>, scalar_prefetch = 0 : i64, scratch_operands = 0 : i64, tpu.core_type = #tpu.core_type<tc>, window_params = [{pipeline_mode = #tpu.pipeline_mode<synchronous>, transform_indices = @transform_0, window_bounds = array<i64: 5, 256>}, {pipeline_mode = #tpu.pipeline_mode<synchronous>, transform_indices = @transform_1, window_bounds = array<i64: 24, 5>}, {pipeline_mode = #tpu.pipeline_mode<synchronous>, transform_indices = @transform_2, window_bounds = array<i64: 6, 8>}, {pipeline_mode = #tpu.pipeline_mode<synchronous>, transform_indices = @transform_3, window_bounds = array<i64: 6, 1>}, {pipeline_mode = #tpu.pipeline_mode<synchronous>, transform_indices = @transform_4, window_bounds = array<i64: 256, 10>}, {pipeline_mode = #tpu.pipeline_mode<synchronous>, transform_indices = @transform_5, window_bounds = array<i64: 10, 256>}, {pipeline_mode = #tpu.pipeline_mode<synchronous>, transform_indices = @transform_6, window_bounds = array<i64: 256, 32>}, {pipeline_mode = #tpu.pipeline_mode<synchronous>, transform_indices = @transform_7, window_bounds = array<i64: 32, 256>}, {pipeline_mode = #tpu.pipeline_mode<synchronous>, transform_indices = @transform_8, window_bounds = array<i64: 6, 256>}]} {
    %c0 = arith.constant 0 : index
    %c0_0 = arith.constant 0 : index
    %0 = vector.load %arg1[%c0, %c0_0] : memref<5x256xf32, #tpu.memory_space<vmem>>, vector<5x256xf32>
    %c0_1 = arith.constant 0 : index
    %c0_2 = arith.constant 0 : index
    %1 = vector.load %arg2[%c0_1, %c0_2] : memref<24x5xf32, #tpu.memory_space<vmem>>, vector<24x5xf32>
    %cst = arith.constant dense<0.000000e+00> : vector<24x256xf32>
    %2 = tpu.matmul %1, %0, %cst {dimension_numbers = #tpu.dot_dimension_numbers<[1], [0], [0], [1], [0, 0, 1, 1], [], []>} : vector<24x5xf32>, vector<5x256xf32>, vector<24x256xf32> -> vector<24x256xf32>
    %3 = vector.extract_strided_slice %2 {offsets = [0, 0], sizes = [8, 256], strides = [1, 1]} : vector<24x256xf32> to vector<8x256xf32>
    %4 = vector.extract_strided_slice %2 {offsets = [8, 0], sizes = [8, 256], strides = [1, 1]} : vector<24x256xf32> to vector<8x256xf32>
    %5 = vector.extract_strided_slice %2 {offsets = [16, 0], sizes = [8, 256], strides = [1, 1]} : vector<24x256xf32> to vector<8x256xf32>
    %c0_3 = arith.constant 0 : index
    %c0_4 = arith.constant 0 : index
    %6 = vector.load %arg5[%c0_3, %c0_4] : memref<256x10xbf16, #tpu.memory_space<vmem>>, vector<256x10xbf16>
    %7 = arith.extf %6 : vector<256x10xbf16> to vector<256x10xf32>
    %c0_5 = arith.constant 0 : index
    %c0_6 = arith.constant 0 : index
    %8 = vector.load %arg6[%c0_5, %c0_6] : memref<10x256xbf16, #tpu.memory_space<vmem>>, vector<10x256xbf16>
    %9 = arith.extf %8 : vector<10x256xbf16> to vector<10x256xf32>
    %c0_7 = arith.constant 0 : index
    %c0_8 = arith.constant 0 : index
    %10 = vector.load %arg7[%c0_7, %c0_8] : memref<256x32xbf16, #tpu.memory_space<vmem>>, vector<256x32xbf16>
    %11 = arith.extf %10 : vector<256x32xbf16> to vector<256x32xf32>
    %c0_9 = arith.constant 0 : index
    %c0_10 = arith.constant 0 : index
    %12 = vector.load %arg8[%c0_9, %c0_10] : memref<32x256xbf16, #tpu.memory_space<vmem>>, vector<32x256xbf16>
    %13 = arith.extf %12 : vector<32x256xbf16> to vector<32x256xf32>
    %cst_11 = arith.constant dense<0.000000e+00> : vector<8x10xf32>
    %14 = tpu.matmul %4, %7, %cst_11 {dimension_numbers = #tpu.dot_dimension_numbers<[1], [0], [0], [1], [0, 0, 1, 1], [], []>} : vector<8x256xf32>, vector<256x10xf32>, vector<8x10xf32> -> vector<8x10xf32>
    %cst_12 = arith.constant dense<0.000000e+00> : vector<8x256xf32>
    %15 = tpu.matmul %14, %9, %cst_12 {dimension_numbers = #tpu.dot_dimension_numbers<[1], [0], [0], [1], [0, 0, 1, 1], [], []>} : vector<8x10xf32>, vector<10x256xf32>, vector<8x256xf32> -> vector<8x256xf32>
    %16 = arith.mulf %3, %15 : vector<8x256xf32>
    %cst_13 = arith.constant dense<0.000000e+00> : vector<256xf32>
    %17 = vector.multi_reduction <add>, %16, %cst_13 [0] : vector<8x256xf32> to vector<256xf32>
    %18 = vector.shape_cast %17 : vector<256xf32> to vector<1x256xf32>
    %cst_14 = arith.constant dense<0.000000e+00> : vector<1x32xf32>
    %19 = tpu.matmul %18, %11, %cst_14 {dimension_numbers = #tpu.dot_dimension_numbers<[1], [0], [0], [1], [0, 0, 1, 1], [], []>} : vector<1x256xf32>, vector<256x32xf32>, vector<1x32xf32> -> vector<1x32xf32>
    %cst_15 = arith.constant dense<0.000000e+00> : vector<1x256xf32>
    %20 = tpu.matmul %19, %13, %cst_15 {dimension_numbers = #tpu.dot_dimension_numbers<[1], [0], [0], [1], [0, 0, 1, 1], [], []>} : vector<1x32xf32>, vector<32x256xf32>, vector<1x256xf32> -> vector<1x256xf32>
    %21 = vector.broadcast %20 : vector<1x256xf32> to vector<8x256xf32>
    %22 = arith.mulf %5, %21 : vector<8x256xf32>
    %c0_16 = arith.constant 0 : index
    %c0_17 = arith.constant 0 : index
    %23 = vector.load %arg3[%c0_16, %c0_17] : memref<6x8xf32, #tpu.memory_space<vmem>>, vector<6x8xf32>
    %cst_18 = arith.constant dense<0.000000e+00> : vector<6x256xf32>
    %24 = tpu.matmul %23, %22, %cst_18 {dimension_numbers = #tpu.dot_dimension_numbers<[1], [0], [0], [1], [0, 0, 1, 1], [], []>} : vector<6x8xf32>, vector<8x256xf32>, vector<6x256xf32> -> vector<6x256xf32>
    %c0_19 = arith.constant 0 : index
    %c0_20 = arith.constant 0 : index
    %25 = vector.load %arg4[%c0_19, %c0_20] : memref<6x1xf32, #tpu.memory_space<vmem>>, vector<6x1xf32>
    %26 = vector.broadcast %25 : vector<6x1xf32> to vector<6x256xf32>
    %27 = arith.addf %24, %26 : vector<6x256xf32>
    %c0_21 = arith.constant 0 : index
    %c0_22 = arith.constant 0 : index
    %28 = vector.load %arg9[%c0_21, %c0_22] : memref<6x256xf32, #tpu.memory_space<vmem>>, vector<6x256xf32>
    tpu.vector_store %arg9[%c0_21, %c0_22], %27 {strides = array<i32>} : memref<6x256xf32, #tpu.memory_space<vmem>>, vector<6x256xf32>,
    return
  }
  func.func @transform_0(%arg0: i32) -> (i32, i32) {
    %c0_i32 = arith.constant 0 : i32
    %c0_i32_0 = arith.constant 0 : i32
    %c0_i32_1 = arith.constant 0 : i32
    return %c0_i32, %c0_i32_0 : i32, i32
  }
  func.func @transform_1(%arg0: i32) -> (i32, i32) {
    %c0_i32 = arith.constant 0 : i32
    %c0_i32_0 = arith.constant 0 : i32
    %c0_i32_1 = arith.constant 0 : i32
    return %c0_i32, %c0_i32_0 : i32, i32
  }
  func.func @transform_2(%arg0: i32) -> (i32, i32) {
    %c0_i32 = arith.constant 0 : i32
    %c0_i32_0 = arith.constant 0 : i32
    %c0_i32_1 = arith.constant 0 : i32
    return %c0_i32, %c0_i32_0 : i32, i32
  }
  func.func @transform_3(%arg0: i32) -> (i32, i32) {
    %c0_i32 = arith.constant 0 : i32
    %c0_i32_0 = arith.constant 0 : i32
    %c0_i32_1 = arith.constant 0 : i32
    return %c0_i32, %c0_i32_0 : i32, i32
  }
  func.func @transform_4(%arg0: i32) -> (i32, i32) {
    %c0_i32 = arith.constant 0 : i32
    %c0_i32_0 = arith.constant 0 : i32
    %c0_i32_1 = arith.constant 0 : i32
    return %c0_i32, %c0_i32_0 : i32, i32
  }
  func.func @transform_5(%arg0: i32) -> (i32, i32) {
    %c0_i32 = arith.constant 0 : i32
    %c0_i32_0 = arith.constant 0 : i32
    %c0_i32_1 = arith.constant 0 : i32
    return %c0_i32, %c0_i32_0 : i32, i32
  }
  func.func @transform_6(%arg0: i32) -> (i32, i32) {
    %c0_i32 = arith.constant 0 : i32
    %c0_i32_0 = arith.constant 0 : i32
    %c0_i32_1 = arith.constant 0 : i32
    return %c0_i32, %c0_i32_0 : i32, i32
  }
  func.func @transform_7(%arg0: i32) -> (i32, i32) {
    %c0_i32 = arith.constant 0 : i32
    %c0_i32_0 = arith.constant 0 : i32
    %c0_i32_1 = arith.constant 0 : i32
    return %c0_i32, %c0_i32_0 : i32, i32
  }
  func.func @transform_8(%arg0: i32) -> (i32, i32) {
    %c0_i32 = arith.constant 0 : i32
    %c0_i32_0 = arith.constant 0 : i32
    %c0_i32_1 = arith.constant 0 : i32
    return %c0_i32, %c0_i32_0 : i32, i32
  }
}

</mosaic_0001>

<llo_original>
// kernel: transformer_forward.1
$region0: #{transformer_forward.1}
  #allocation0 [shape = 'u32[]', space=smem, size = 0x4, offset = 0x4, fixed_abs, tag = 'smem constant byte address 0x4 - core index']
  #allocation1 [shape = 'u32[72,128]{1,0:T(1,128)}', space=vmem, size = 0x9000, scoped, tag = 'internal scratch']
  %s0 = inlined_call_operand.vmem [shape: f32[5,256], index: 0, kind: input, shape index: {}]
  %s1 = inlined_call_operand.vmem [shape: f32[24,5], index: 1, kind: input, shape index: {}]
  %s2 = inlined_call_operand.vmem [shape: f32[6,8], index: 2, kind: input, shape index: {}]
  %s3 = inlined_call_operand.vmem [shape: f32[6,1], index: 3, kind: input, shape index: {}]
  %s4 = inlined_call_operand.vmem [shape: bf16[256,10], index: 4, kind: input, shape index: {}]
  %s5 = inlined_call_operand.vmem [shape: bf16[10,256], index: 5, kind: input, shape index: {}]
  %s6 = inlined_call_operand.vmem [shape: bf16[256,32], index: 6, kind: input, shape index: {}]
  %s7 = inlined_call_operand.vmem [shape: bf16[32,256], index: 7, kind: input, shape index: {}]
  %s8 = inlined_call_operand.vmem [shape: f32[6,256], index: 8, kind: output, shape index: {}]
  %s9 = sld [smem:[#allocation0]]
  $region42: #{transformer_forward.1} parent=0
    _
  %s11 = ssub.s32 1, %s9
  %s12 = scalar_select 0, %s11, %s9
  // Predicated region
  $region2: #{transformer_forward.1} parent=0 // pred_check
    _
  $region3: #{transformer_forward.1} parent=0 // pred_check_branch
    %14 = sbr.rel (0) target = $region5
  $region4: #{transformer_forward.1} parent=0 // pred_region
    _
  $region5: #{transformer_forward.1} parent=0 // pred_fallthru
    _
  // Predicated region
  $region6: #{transformer_forward.1} parent=0 // pred_check
    _
  $region7: #{transformer_forward.1} parent=0 // pred_check_branch
    %16 = sbr.rel (0) target = $region9
  $region8: #{transformer_forward.1} parent=0 // pred_region
    _
  $region9: #{transformer_forward.1} parent=0 // pred_fallthru
    _
  // Predicated region
  $region10: #{transformer_forward.1} parent=0 // pred_check
    _
  $region11: #{transformer_forward.1} parent=0 // pred_check_branch
    %18 = sbr.rel (0) target = $region13
  $region12: #{transformer_forward.1} parent=0 // pred_region
    _
  $region13: #{transformer_forward.1} parent=0 // pred_fallthru
    _
  // Predicated region
  $region14: #{transformer_forward.1} parent=0 // pred_check
    _
  $region15: #{transformer_forward.1} parent=0 // pred_check_branch
    %20 = sbr.rel (0) target = $region17
  $region16: #{transformer_forward.1} parent=0 // pred_region
    _
  $region17: #{transformer_forward.1} parent=0 // pred_fallthru
    _
  // Predicated region
  $region18: #{transformer_forward.1} parent=0 // pred_check
    _
  $region19: #{transformer_forward.1} parent=0 // pred_check_branch
    %22 = sbr.rel (0) target = $region21
  $region20: #{transformer_forward.1} parent=0 // pred_region
    _
  $region21: #{transformer_forward.1} parent=0 // pred_fallthru
    _
  // Predicated region
  $region22: #{transformer_forward.1} parent=0 // pred_check
    _
  $region23: #{transformer_forward.1} parent=0 // pred_check_branch
    %24 = sbr.rel (0) target = $region25
  $region24: #{transformer_forward.1} parent=0 // pred_region
    _
  $region25: #{transformer_forward.1} parent=0 // pred_fallthru
    _
  // Predicated region
  $region26: #{transformer_forward.1} parent=0 // pred_check
    _
  $region27: #{transformer_forward.1} parent=0 // pred_check_branch
    %26 = sbr.rel (0) target = $region29
  $region28: #{transformer_forward.1} parent=0 // pred_region
    _
  $region29: #{transformer_forward.1} parent=0 // pred_fallthru
    _
  // Predicated region
  $region30: #{transformer_forward.1} parent=0 // pred_check
    _
  $region31: #{transformer_forward.1} parent=0 // pred_check_branch
    %28 = sbr.rel (0) target = $region33
  $region32: #{transformer_forward.1} parent=0 // pred_region
    _
  $region33: #{transformer_forward.1} parent=0 // pred_fallthru
    _
  %v29 = vld [vmem:[%s0] sm:$0x1f]
  %v30 = vld [vmem:[%s0 + $0x8] sm:$0x1f]
  %v31 = vld [vmem:[%s1] sm:$0xff]
  %v32 = vld [vmem:[%s1 + $0x8] sm:$0xff]
  %v33 = vld [vmem:[%s1 + $0x10] sm:$0xff]
  %vm34 = vcmask 39936
  %v36 = vsel %vm34, %v31, 0
  %v39 = vsel %vm34, %v32, 0
  %v42 = vsel %vm34, %v33, 0
  %vm44 = vcmask 1044480
  %v46 = vsel %vm44, %v29, 0
  %v49 = vsel %vm44, %v30, 0
  %51 = vmatpush.msra.mxu0 0.0
  %52 = vmatpush.msra.mxu0 0.0
  %53 = vmatpush.msra.mxu0 0.0
  %54 = vmatpush.msra.mxu0 0.0
  %55 = vmatpush.msra.mxu0 0.0
  %56 = vmatpush.msra.mxu0 0.0
  %57 = vmatpush.msra.mxu0 0.0
  %58 = vmatpush.msra.mxu0 0.0
  %59 = vmatpush.msra.mxu0 0.0
  %60 = vmatpush.msra.mxu0 0.0
  %61 = vmatpush.msra.mxu0 0.0
  %62 = vmatpush.msra.mxu0 0.0
  %63 = vmatpush.msra.mxu0 0.0
  %64 = vmatpush.msra.mxu0 0.0
  %65 = vmatpush.msra.mxu0 0.0
  %66 = vmatpush.msra.mxu0 %v46
  %67 = vmatmul.f32.gmra.mxu0 %v36
  %v68 = vpop.f32.mrf.mxu0
  %v69 = vadd.f32 0.0, %v68
  %70 = vmatmul.f32.gmra.mxu0 %v39
  %v71 = vpop.f32.mrf.mxu0
  %v72 = vadd.f32 0.0, %v71
  %73 = vmatmul.f32.gmra.mxu0 %v42
  %v74 = vpop.f32.mrf.mxu0
  %v75 = vadd.f32 0.0, %v74
  %76 = vdwg.mxu0
  %77 = vmatpush.msra.mxu0 0.0
  %78 = vmatpush.msra.mxu0 0.0
  %79 = vmatpush.msra.mxu0 0.0
  %80 = vmatpush.msra.mxu0 0.0
  %81 = vmatpush.msra.mxu0 0.0
  %82 = vmatpush.msra.mxu0 0.0
  %83 = vmatpush.msra.mxu0 0.0
  %84 = vmatpush.msra.mxu0 0.0
  %85 = vmatpush.msra.mxu0 0.0
  %86 = vmatpush.msra.mxu0 0.0
  %87 = vmatpush.msra.mxu0 0.0
  %88 = vmatpush.msra.mxu0 0.0
  %89 = vmatpush.msra.mxu0 0.0
  %90 = vmatpush.msra.mxu0 0.0
  %91 = vmatpush.msra.mxu0 0.0
  %92 = vmatpush.msra.mxu0 %v49
  %93 = vmatmul.f32.gmra.mxu0 %v36
  %v94 = vpop.f32.mrf.mxu0
  %v95 = vadd.f32 0.0, %v94
  %96 = vmatmul.f32.gmra.mxu0 %v39
  %v97 = vpop.f32.mrf.mxu0
  %v98 = vadd.f32 0.0, %v97
  %99 = vmatmul.f32.gmra.mxu0 %v42
  %v100 = vpop.f32.mrf.mxu0
  %v101 = vadd.f32 0.0, %v100
  %102 = vdwg.mxu0
  %v103 = vld [vmem:[%s4] sm:$0xf]
  %v104 = vld [vmem:[%s4 + $0x4] sm:$0xf]
  %v105 = vld [vmem:[%s4 + $0x8] sm:$0xf]
  %v106 = vld [vmem:[%s4 + $0xc] sm:$0xf]
  %v107 = vld [vmem:[%s4 + $0x10] sm:$0xf]
  %v108 = vld [vmem:[%s4 + $0x14] sm:$0xf]
  %v109 = vld [vmem:[%s4 + $0x18] sm:$0xf]
  %v110 = vld [vmem:[%s4 + $0x1c] sm:$0xf]
  %v111 = vld [vmem:[%s4 + $0x20] sm:$0xf]
  %v112 = vld [vmem:[%s4 + $0x24] sm:$0xf]
  %v113 = vld [vmem:[%s4 + $0x28] sm:$0xf]
  %v114 = vld [vmem:[%s4 + $0x2c] sm:$0xf]
  %v115 = vld [vmem:[%s4 + $0x30] sm:$0xf]
  %v116 = vld [vmem:[%s4 + $0x34] sm:$0xf]
  %v117 = vld [vmem:[%s4 + $0x38] sm:$0xf]
  %v118 = vld [vmem:[%s4 + $0x3c] sm:$0xf]
  %v119 = vld [vmem:[%s4 + $0x40] sm:$0xf]
  %v120 = vld [vmem:[%s4 + $0x44] sm:$0xf]
  %v121 = vld [vmem:[%s4 + $0x48] sm:$0xf]
  %v122 = vld [vmem:[%s4 + $0x4c] sm:$0xf]
  %v123 = vld [vmem:[%s4 + $0x50] sm:$0xf]
  %v124 = vld [vmem:[%s4 + $0x54] sm:$0xf]
  %v125 = vld [vmem:[%s4 + $0x58] sm:$0xf]
  %v126 = vld [vmem:[%s4 + $0x5c] sm:$0xf]
  %v127 = vld [vmem:[%s4 + $0x60] sm:$0xf]
  %v128 = vld [vmem:[%s4 + $0x64] sm:$0xf]
  %v129 = vld [vmem:[%s4 + $0x68] sm:$0xf]
  %v130 = vld [vmem:[%s4 + $0x6c] sm:$0xf]
  %v131 = vld [vmem:[%s4 + $0x70] sm:$0xf]
  %v132 = vld [vmem:[%s4 + $0x74] sm:$0xf]
  %v133 = vld [vmem:[%s4 + $0x78] sm:$0xf]
  %v134 = vld [vmem:[%s4 + $0x7c] sm:$0xf]
  %v135 = vunpack.c.l.bf16 %v103
  %v136 = vunpack.c.l.bf16 %v104
  %v137 = vunpack.c.l.bf16 %v105
  %v138 = vunpack.c.l.bf16 %v106
  %v139 = vunpack.c.l.bf16 %v107
  %v140 = vunpack.c.l.bf16 %v108
  %v141 = vunpack.c.l.bf16 %v109
  %v142 = vunpack.c.l.bf16 %v110
  %v143 = vunpack.c.l.bf16 %v111
  %v144 = vunpack.c.l.bf16 %v112
  %v145 = vunpack.c.l.bf16 %v113
  %v146 = vunpack.c.l.bf16 %v114
  %v147 = vunpack.c.l.bf16 %v115
  %v148 = vunpack.c.l.bf16 %v116
  %v149 = vunpack.c.l.bf16 %v117
  %v150 = vunpack.c.l.bf16 %v118
  %v151 = vunpack.c.l.bf16 %v119
  %v152 = vunpack.c.l.bf16 %v120
  %v153 = vunpack.c.l.bf16 %v121
  %v154 = vunpack.c.l.bf16 %v122
  %v155 = vunpack.c.l.bf16 %v123
  %v156 = vunpack.c.l.bf16 %v124
  %v157 = vunpack.c.l.bf16 %v125
  %v158 = vunpack.c.l.bf16 %v126
  %v159 = vunpack.c.l.bf16 %v127
  %v160 = vunpack.c.l.bf16 %v128
  %v161 = vunpack.c.l.bf16 %v129
  %v162 = vunpack.c.l.bf16 %v130
  %v163 = vunpack.c.l.bf16 %v131
  %v164 = vunpack.c.l.bf16 %v132
  %v165 = vunpack.c.l.bf16 %v133
  %v166 = vunpack.c.l.bf16 %v134
  %v167 = vld [vmem:[%s5] sm:$0xff]
  %v168 = vld [vmem:[%s5 + $0x8] sm:$0x11]
  %v169 = vunpack.c.l.bf16 %v167
  %v170 = vunpack.c.h.bf16 %v167
  %v171 = vunpack.c.l.bf16 %v168
  %v172 = vunpack.c.h.bf16 %v168
  %v173 = vld [vmem:[%s6] sm:$0xf]
  %v174 = vld [vmem:[%s6 + $0x4] sm:$0xf]
  %v175 = vld [vmem:[%s6 + $0x8] sm:$0xf]
  %v176 = vld [vmem:[%s6 + $0xc] sm:$0xf]
  %v177 = vld [vmem:[%s6 + $0x10] sm:$0xf]
  %v178 = vld [vmem:[%s6 + $0x14] sm:$0xf]
  %v179 = vld [vmem:[%s6 + $0x18] sm:$0xf]
  %v180 = vld [vmem:[%s6 + $0x1c] sm:$0xf]
  %v181 = vld [vmem:[%s6 + $0x20] sm:$0xf]
  %v182 = vld [vmem:[%s6 + $0x24] sm:$0xf]
  %v183 = vld [vmem:[%s6 + $0x28] sm:$0xf]
  %v184 = vld [vmem:[%s6 + $0x2c] sm:$0xf]
  %v185 = vld [vmem:[%s6 + $0x30] sm:$0xf]
  %v186 = vld [vmem:[%s6 + $0x34] sm:$0xf]
  %v187 = vld [vmem:[%s6 + $0x38] sm:$0xf]
  %v188 = vld [vmem:[%s6 + $0x3c] sm:$0xf]
  %v189 = vld [vmem:[%s6 + $0x40] sm:$0xf]
  %v190 = vld [vmem:[%s6 + $0x44] sm:$0xf]
  %v191 = vld [vmem:[%s6 + $0x48] sm:$0xf]
  %v192 = vld [vmem:[%s6 + $0x4c] sm:$0xf]
  %v193 = vld [vmem:[%s6 + $0x50] sm:$0xf]
  %v194 = vld [vmem:[%s6 + $0x54] sm:$0xf]
  %v195 = vld [vmem:[%s6 + $0x58] sm:$0xf]
  %v196 = vld [vmem:[%s6 + $0x5c] sm:$0xf]
  %v197 = vld [vmem:[%s6 + $0x60] sm:$0xf]
  %v198 = vld [vmem:[%s6 + $0x64] sm:$0xf]
  %v199 = vld [vmem:[%s6 + $0x68] sm:$0xf]
  %v200 = vld [vmem:[%s6 + $0x6c] sm:$0xf]
  %v201 = vld [vmem:[%s6 + $0x70] sm:$0xf]
  %v202 = vld [vmem:[%s6 + $0x74] sm:$0xf]
  %v203 = vld [vmem:[%s6 + $0x78] sm:$0xf]
  %v204 = vld [vmem:[%s6 + $0x7c] sm:$0xf]
  %v205 = vunpack.c.l.bf16 %v173
  %v206 = vunpack.c.l.bf16 %v174
  %v207 = vunpack.c.l.bf16 %v175
  %v208 = vunpack.c.l.bf16 %v176
  %v209 = vunpack.c.l.bf16 %v177
  %v210 = vunpack.c.l.bf16 %v178
  %v211 = vunpack.c.l.bf16 %v179
  %v212 = vunpack.c.l.bf16 %v180
  %v213 = vunpack.c.l.bf16 %v181
  %v214 = vunpack.c.l.bf16 %v182
  %v215 = vunpack.c.l.bf16 %v183
  %v216 = vunpack.c.l.bf16 %v184
  %v217 = vunpack.c.l.bf16 %v185
  %v218 = vunpack.c.l.bf16 %v186
  %v219 = vunpack.c.l.bf16 %v187
  %v220 = vunpack.c.l.bf16 %v188
  %v221 = vunpack.c.l.bf16 %v189
  %v222 = vunpack.c.l.bf16 %v190
  %v223 = vunpack.c.l.bf16 %v191
  %v224 = vunpack.c.l.bf16 %v192
  %v225 = vunpack.c.l.bf16 %v193
  %v226 = vunpack.c.l.bf16 %v194
  %v227 = vunpack.c.l.bf16 %v195
  %v228 = vunpack.c.l.bf16 %v196
  %v229 = vunpack.c.l.bf16 %v197
  %v230 = vunpack.c.l.bf16 %v198
  %v231 = vunpack.c.l.bf16 %v199
  %v232 = vunpack.c.l.bf16 %v200
  %v233 = vunpack.c.l.bf16 %v201
  %v234 = vunpack.c.l.bf16 %v202
  %v235 = vunpack.c.l.bf16 %v203
  %v236 = vunpack.c.l.bf16 %v204
  %v237 = vld [vmem:[%s7] sm:$0xff]
  %v238 = vld [vmem:[%s7 + $0x8] sm:$0xff]
  %v239 = vld [vmem:[%s7 + $0x10] sm:$0xff]
  %v240 = vld [vmem:[%s7 + $0x18] sm:$0xff]
  %v241 = vunpack.c.l.bf16 %v237
  %v242 = vunpack.c.h.bf16 %v237
  %v243 = vunpack.c.l.bf16 %v238
  %v244 = vunpack.c.h.bf16 %v238
  %v245 = vunpack.c.l.bf16 %v239
  %v246 = vunpack.c.h.bf16 %v239
  %v247 = vunpack.c.l.bf16 %v240
  %v248 = vunpack.c.h.bf16 %v240
  %249 = vmatpush.msra.mxu0 %v150
  %250 = vmatpush.msra.mxu0 %v149
  %251 = vmatpush.msra.mxu0 %v148
  %252 = vmatpush.msra.mxu0 %v147
  %253 = vmatpush.msra.mxu0 %v146
  %254 = vmatpush.msra.mxu0 %v145
  %255 = vmatpush.msra.mxu0 %v144
  %256 = vmatpush.msra.mxu0 %v143
  %257 = vmatpush.msra.mxu0 %v142
  %258 = vmatpush.msra.mxu0 %v141
  %259 = vmatpush.msra.mxu0 %v140
  %260 = vmatpush.msra.mxu0 %v139
  %261 = vmatpush.msra.mxu0 %v138
  %262 = vmatpush.msra.mxu0 %v137
  %263 = vmatpush.msra.mxu0 %v136
  %264 = vmatpush.msra.mxu0 %v135
  %265 = vmatmul.f32.gmra.mxu0 %v72
  %v266 = vpop.f32.mrf.mxu0
  %v267 = vadd.f32 0.0, %v266
  %268 = vdwg.mxu0
  %269 = vmatpush.msra.mxu0 %v166
  %270 = vmatpush.msra.mxu0 %v165
  %271 = vmatpush.msra.mxu0 %v164
  %272 = vmatpush.msra.mxu0 %v163
  %273 = vmatpush.msra.mxu0 %v162
  %274 = vmatpush.msra.mxu0 %v161
  %275 = vmatpush.msra.mxu0 %v160
  %276 = vmatpush.msra.mxu0 %v159
  %277 = vmatpush.msra.mxu0 %v158
  %278 = vmatpush.msra.mxu0 %v157
  %279 = vmatpush.msra.mxu0 %v156
  %280 = vmatpush.msra.mxu0 %v155
  %281 = vmatpush.msra.mxu0 %v154
  %282 = vmatpush.msra.mxu0 %v153
  %283 = vmatpush.msra.mxu0 %v152
  %284 = vmatpush.msra.mxu0 %v151
  %285 = vmatmul.f32.gmra.mxu0 %v98
  %v286 = vpop.f32.mrf.mxu0
  %v287 = vadd.f32 %v267, %v286
  %288 = vdwg.mxu0
  %vm289 = vcmask 80896
  %v291 = vsel %vm289, %v287, 0
  %vm293 = vcmask 1041408
  %v295 = vsel %vm293, %v171, 0
  %v298 = vsel %vm293, %v172, 0
  %300 = vmatpush.msra.mxu0 0.0
  %301 = vmatpush.msra.mxu0 0.0
  %302 = vmatpush.msra.mxu0 0.0
  %303 = vmatpush.msra.mxu0 0.0
  %304 = vmatpush.msra.mxu0 0.0
  %305 = vmatpush.msra.mxu0 0.0
  %306 = vmatpush.msra.mxu0 0.0
  %307 = vmatpush.msra.mxu0 0.0
  %308 = vmatpush.msra.mxu0 0.0
  %309 = vmatpush.msra.mxu0 0.0
  %310 = vmatpush.msra.mxu0 0.0
  %311 = vmatpush.msra.mxu0 0.0
  %312 = vmatpush.msra.mxu0 0.0
  %313 = vmatpush.msra.mxu0 0.0
  %314 = vmatpush.msra.mxu0 %v295
  %315 = vmatpush.msra.mxu0 %v169
  %316 = vmatmul.f32.gmra.mxu0 %v291
  %v317 = vpop.f32.mrf.mxu0
  %v318 = vadd.f32 0.0, %v317
  %319 = vdwg.mxu0
  %320 = vmatpush.msra.mxu0 0.0
  %321 = vmatpush.msra.mxu0 0.0
  %322 = vmatpush.msra.mxu0 0.0
  %323 = vmatpush.msra.mxu0 0.0
  %324 = vmatpush.msra.mxu0 0.0
  %325 = vmatpush.msra.mxu0 0.0
  %326 = vmatpush.msra.mxu0 0.0
  %327 = vmatpush.msra.mxu0 0.0
  %328 = vmatpush.msra.mxu0 0.0
  %329 = vmatpush.msra.mxu0 0.0
  %330 = vmatpush.msra.mxu0 0.0
  %331 = vmatpush.msra.mxu0 0.0
  %332 = vmatpush.msra.mxu0 0.0
  %333 = vmatpush.msra.mxu0 0.0
  %334 = vmatpush.msra.mxu0 %v298
  %335 = vmatpush.msra.mxu0 %v170
  %336 = vmatmul.f32.gmra.mxu0 %v291
  %v337 = vpop.f32.mrf.mxu0
  %v338 = vadd.f32 0.0, %v337
  %339 = vdwg.mxu0
  %v340 = vmul.f32 %v69, %v318
  %v341 = vmul.f32 %v95, %v338
  %v342 = vrot.slane %v340, 4
  %v343 = vadd.f32 %v340, %v342
  %v344 = vrot.slane %v343, 2
  %v345 = vadd.f32 %v343, %v344
  %v346 = vrot.slane %v345, 1
  %v347 = vadd.f32 %v345, %v346
  %v348 = vrot.slane %v341, 4
  %v349 = vadd.f32 %v341, %v348
  %v350 = vrot.slane %v349, 2
  %v351 = vadd.f32 %v349, %v350
  %v352 = vrot.slane %v351, 1
  %v353 = vadd.f32 %v351, %v352
  %354 = vmatpush.msra.mxu0 %v220
  %355 = vmatpush.msra.mxu0 %v219
  %356 = vmatpush.msra.mxu0 %v218
  %357 = vmatpush.msra.mxu0 %v217
  %358 = vmatpush.msra.mxu0 %v216
  %359 = vmatpush.msra.mxu0 %v215
  %360 = vmatpush.msra.mxu0 %v214
  %361 = vmatpush.msra.mxu0 %v213
  %362 = vmatpush.msra.mxu0 %v212
  %363 = vmatpush.msra.mxu0 %v211
  %364 = vmatpush.msra.mxu0 %v210
  %365 = vmatpush.msra.mxu0 %v209
  %366 = vmatpush.msra.mxu0 %v208
  %367 = vmatpush.msra.mxu0 %v207
  %368 = vmatpush.msra.mxu0 %v206
  %369 = vmatpush.msra.mxu0 %v205
  %370 = vmatmul.f32.gmra.mxu0 %v347
  %v371 = vpop.f32.mrf.mxu0
  %v372 = vadd.f32 0.0, %v371
  %373 = vdwg.mxu0
  %374 = vmatpush.msra.mxu0 %v236
  %375 = vmatpush.msra.mxu0 %v235
  %376 = vmatpush.msra.mxu0 %v234
  %377 = vmatpush.msra.mxu0 %v233
  %378 = vmatpush.msra.mxu0 %v232
  %379 = vmatpush.msra.mxu0 %v231
  %380 = vmatpush.msra.mxu0 %v230
  %381 = vmatpush.msra.mxu0 %v229
  %382 = vmatpush.msra.mxu0 %v228
  %383 = vmatpush.msra.mxu0 %v227
  %384 = vmatpush.msra.mxu0 %v226
  %385 = vmatpush.msra.mxu0 %v225
  %386 = vmatpush.msra.mxu0 %v224
  %387 = vmatpush.msra.mxu0 %v223
  %388 = vmatpush.msra.mxu0 %v222
  %389 = vmatpush.msra.mxu0 %v221
  %390 = vmatmul.f32.gmra.mxu0 %v353
  %v391 = vpop.f32.mrf.mxu0
  %v392 = vadd.f32 %v372, %v391
  %393 = vdwg.mxu0
  %vm394 = vcmask 261120
  %v396 = vsel %vm394, %v392, 0
  %398 = vmatpush.msra.mxu0 0.0
  %399 = vmatpush.msra.mxu0 0.0
  %400 = vmatpush.msra.mxu0 0.0
  %401 = vmatpush.msra.mxu0 0.0
  %402 = vmatpush.msra.mxu0 0.0
  %403 = vmatpush.msra.mxu0 0.0
  %404 = vmatpush.msra.mxu0 0.0
  %405 = vmatpush.msra.mxu0 0.0
  %406 = vmatpush.msra.mxu0 0.0
  %407 = vmatpush.msra.mxu0 0.0
  %408 = vmatpush.msra.mxu0 0.0
  %409 = vmatpush.msra.mxu0 0.0
  %410 = vmatpush.msra.mxu0 %v247
  %411 = vmatpush.msra.mxu0 %v245
  %412 = vmatpush.msra.mxu0 %v243
  %413 = vmatpush.msra.mxu0 %v241
  %414 = vmatmul.f32.gmra.mxu0 %v396
  %v415 = vpop.f32.mrf.mxu0
  %v416 = vadd.f32 0.0, %v415
  %417 = vdwg.mxu0
  %418 = vmatpush.msra.mxu0 0.0
  %419 = vmatpush.msra.mxu0 0.0
  %420 = vmatpush.msra.mxu0 0.0
  %421 = vmatpush.msra.mxu0 0.0
  %422 = vmatpush.msra.mxu0 0.0
  %423 = vmatpush.msra.mxu0 0.0
  %424 = vmatpush.msra.mxu0 0.0
  %425 = vmatpush.msra.mxu0 0.0
  %426 = vmatpush.msra.mxu0 0.0
  %427 = vmatpush.msra.mxu0 0.0
  %428 = vmatpush.msra.mxu0 0.0
  %429 = vmatpush.msra.mxu0 0.0
  %430 = vmatpush.msra.mxu0 %v248
  %431 = vmatpush.msra.mxu0 %v246
  %432 = vmatpush.msra.mxu0 %v244
  %433 = vmatpush.msra.mxu0 %v242
  %434 = vmatmul.f32.gmra.mxu0 %v396
  %v435 = vpop.f32.mrf.mxu0
  %v436 = vadd.f32 0.0, %v435
  %437 = vdwg.mxu0
  %v438 = vperm.slane %v416, 0
  %v439 = vperm.slane %v436, 0
  %v440 = vmul.f32 %v75, %v438
  %v441 = vmul.f32 %v101, %v439
  %v442 = vld [vmem:[%s2] sm:$0x3f]
  %v443 = vld [vmem:[%s3] sm:$0x3f]
  %445 = vset.pattern.permute.xlu0 0
  %446 = vperm.xlu0 %445, %v443
  %v447 = vpop.permute.xlu0 %446
  %vm449 = vcmask 64512
  %v451 = vsel %vm449, %v442, 0
  %453 = vmatpush.msra.mxu0 0.0
  %454 = vmatpush.msra.mxu0 0.0
  %455 = vmatpush.msra.mxu0 0.0
  %456 = vmatpush.msra.mxu0 0.0
  %457 = vmatpush.msra.mxu0 0.0
  %458 = vmatpush.msra.mxu0 0.0
  %459 = vmatpush.msra.mxu0 0.0
  %460 = vmatpush.msra.mxu0 0.0
  %461 = vmatpush.msra.mxu0 0.0
  %462 = vmatpush.msra.mxu0 0.0
  %463 = vmatpush.msra.mxu0 0.0
  %464 = vmatpush.msra.mxu0 0.0
  %465 = vmatpush.msra.mxu0 0.0
  %466 = vmatpush.msra.mxu0 0.0
  %467 = vmatpush.msra.mxu0 0.0
  %468 = vmatpush.msra.mxu0 %v440
  %469 = vmatmul.f32.gmra.mxu0 %v451
  %v470 = vpop.f32.mrf.mxu0
  %v471 = vadd.f32 %v447, %v470
  %472 = vdwg.mxu0
  %473 = vmatpush.msra.mxu0 0.0
  %474 = vmatpush.msra.mxu0 0.0
  %475 = vmatpush.msra.mxu0 0.0
  %476 = vmatpush.msra.mxu0 0.0
  %477 = vmatpush.msra.mxu0 0.0
  %478 = vmatpush.msra.mxu0 0.0
  %479 = vmatpush.msra.mxu0 0.0
  %480 = vmatpush.msra.mxu0 0.0
  %481 = vmatpush.msra.mxu0 0.0
  %482 = vmatpush.msra.mxu0 0.0
  %483 = vmatpush.msra.mxu0 0.0
  %484 = vmatpush.msra.mxu0 0.0
  %485 = vmatpush.msra.mxu0 0.0
  %486 = vmatpush.msra.mxu0 0.0
  %487 = vmatpush.msra.mxu0 0.0
  %488 = vmatpush.msra.mxu0 %v441
  %489 = vmatmul.f32.gmra.mxu0 %v451
  %v490 = vpop.f32.mrf.mxu0
  %v491 = vadd.f32 %v447, %v490
  %492 = vdwg.mxu0
  %493 = vst [vmem:[%s8] sm:$0x3f] %v471
  %494 = vst [vmem:[%s8 + $0x8] sm:$0x3f] %v491
  // Predicated region
  $region34: #{transformer_forward.1} parent=0 // pred_check
    _
  $region35: #{transformer_forward.1} parent=0 // pred_check_branch
    %496 = sbr.rel (0) target = $region37
  $region36: #{transformer_forward.1} parent=0 // pred_region
    _
  $region37: #{transformer_forward.1} parent=0 // pred_fallthru
    _
  // Predicated region
  $region38: #{transformer_forward.1} parent=0 // pred_check
    _
  $region39: #{transformer_forward.1} parent=0 // pred_check_branch
    %498 = sbr.rel (0) target = $region41
  $region40: #{transformer_forward.1} parent=0 // pred_region
    _
  $region41: #{transformer_forward.1} parent=0 // pred_fallthru
    _

</llo_original>
